<compile_context>
chip_gen: v7x
topology: tpu7x:2x2x1
jax: 0.10.0
libtpu: 0.0.40
codegen_flags: <defaults>
</compile_context>

<pallas_src>
import math

import jax
import jax.numpy as jnp
from jax.experimental import pallas as pl
from jax.experimental.pallas import tpu as pltpu

LANE = 128


def _build_encoding(embed_dim: int, max_seq_len: int) -> jnp.ndarray:
    """Deterministic sinusoidal table, mirrors PositionalEncoding.__init__ (f32)."""
    assert embed_dim % 2 == 0, "PositionalEncoding assumes an even embed_dim"
    position = jnp.arange(max_seq_len, dtype=jnp.float32)[:, None]          # (L, 1)
    div_term = jnp.exp(
        jnp.arange(0, embed_dim, 2, dtype=jnp.float32)
        * (-math.log(10000.0) / embed_dim)
    )                                                                        # (D/2,)
    angles = position * div_term                                             # (L, D/2)
    enc = jnp.zeros((max_seq_len, embed_dim), dtype=jnp.float32)
    enc = enc.at[:, 0::2].set(jnp.sin(angles))
    enc = enc.at[:, 1::2].set(jnp.cos(angles))
    return enc


def _pe_add_kernel(x_ref, enc_ref, o_ref):
    # x_ref / o_ref : (TB, TS, D2) tile
    # enc_ref       : (TS, D2) positional-encoding tile (shared across batch)
    # In-kernel cast rides the otherwise-idle VPU under a DMA-bound add.
    enc = enc_ref[...].astype(o_ref.dtype)
    o_ref[...] = x_ref[...] + enc[None, :, :]


def positional_encoding_forward(x: jnp.ndarray, encoding: jnp.ndarray) -> jnp.ndarray:
    """x: [B, S, D]; encoding: [max_seq_len, D] (f32 table). Returns x + encoding[:S]."""
    B, S, D = x.shape
    L = encoding.shape[0]
    assert S <= L, "sequence length exceeds max_seq_len of the encoding table"

    # --- Lane-dense view: make the last dim a multiple of 128 when possible ---
    if D % LANE == 0:
        x2, S2, D2 = x, S, D
        enc2 = encoding                              # full table; BlockSpec picks rows
    elif (S * D) % LANE == 0:
        S2, D2 = (S * D) // LANE, LANE
        x2 = x.reshape(B, S2, D2)                    # contiguous, no-copy reshape
        if (L * D) % LANE == 0:
            enc2 = encoding.reshape((L * D) // LANE, LANE)
        else:
            enc2 = encoding[:S].reshape(S2, D2)
    else:
        # TODO(synk): sub-128 last dim -> masked partial-lane stores; pad D upstream.
        x2, enc2, S2, D2 = x, encoding, S, D

    itemsize = jnp.dtype(x.dtype).itemsize

    # --- Generation-aware VMEM budget and bytes-based tile sizing ---
    try:
        vmem_phys = int(getattr(pltpu.get_tpu_info(), "vmem_capacity_bytes",
                                64 * 1024 * 1024))
    except Exception:
        vmem_phys = 64 * 1024 * 1024                 # conservative (v7x per-TC)
    vmem_budget = min((vmem_phys * 6) // 10, 96 * 1024 * 1024)
    # 6 live tiles: 2 x + 2 out + 2 enc (double buffering on every operand).
    tile_target = max(1 << 20, min(8 << 20, vmem_budget // 6))

    sub = {4: 8, 2: 16, 1: 32}.get(itemsize, 8)      # sublane packing per dtype
    rows_budget = max(sub, tile_target // max(1, D2 * itemsize))
    if rows_budget >= S2:
        TS = S2                                      # whole sequence in one tile
        TB = max(1, min(B, tile_target // max(1, S2 * D2 * itemsize)))
    else:
        TS = max(sub, (rows_budget // sub) * sub)
        TB = 1

    # BlockSpec legality for enc: 2nd-to-last block dim must be a multiple of 8
    # or equal the array's full dim.  Slice the tiny tail case on the host.
    if TS % 8 != 0 and TS != enc2.shape[0]:
        enc2 = enc2[:S2]

    n_s = pl.cdiv(S2, TS)
    n_b = pl.cdiv(B, TB)

    if n_s > 1:
        # seq tiles OUTER (parallel), batch INNER: the shared enc tile stays
        # resident in VMEM across the whole inner batch loop (DMA skipped).
        grid = (n_s, n_b)
        x_map = lambda s, b: (b, s, 0)
        enc_map = lambda s, b: (s, 0)
    else:
        # Single seq tile: put the batch-tile axis outer/parallel so both v7x
        # TensorCores get work; the enc block index never changes anyway.
        grid = (n_b, n_s)
        x_map = lambda b, s: (b, s, 0)
        enc_map = lambda b, s: (s, 0)

    out2 = pl.pallas_call(
        _pe_add_kernel,
        out_shape=jax.ShapeDtypeStruct((B, S2, D2), x.dtype),
        grid_spec=pltpu.PrefetchScalarGridSpec(
            num_scalar_prefetch=0,
            grid=grid,
            in_specs=[
                pl.BlockSpec((TB, TS, D2), x_map),
                pl.BlockSpec((TS, D2), enc_map),
            ],
            out_specs=pl.BlockSpec((TB, TS, D2), x_map),
        ),
        compiler_params=pltpu.CompilerParams(
            dimension_semantics=("parallel", "arbitrary"),
            vmem_limit_bytes=min((vmem_phys * 3) // 4, 100 * 1024 * 1024),
        ),
    )(x2, enc2)

    return out2.reshape(B, S, D)


if __name__ == "__main__":
    embed_dim = 32
    max_seq_len = 16
    batch = 2
    seq = 8

    key = jax.random.PRNGKey(0)
    x = jax.random.normal(key, (batch, seq, embed_dim), dtype=jnp.float32)

    encoding = _build_encoding(embed_dim, max_seq_len)

    out = positional_encoding_forward(x, encoding)
    out = jax.block_until_ready(out)

    # Reference check against plain-JAX semantics of the PyTorch forward.
    ref = x + encoding[None, :seq, :]
    assert out.shape == (batch, seq, embed_dim)
    assert jnp.allclose(out, ref, atol=1e-6), "mismatch vs reference"

    print("KERNEL_OK")
</pallas_src>

<mosaic_0001>
module attributes {stable_mosaic.version = 11 : i64} {
  func.func @_pe_add_kernel(%arg0: i32, %arg1: i32, %arg2: memref<2x2x128xf32, #tpu.memory_space<vmem>>, %arg3: memref<2x128xf32, #tpu.memory_space<vmem>>, %arg4: memref<2x2x128xf32, #tpu.memory_space<vmem>>) attributes {dimension_semantics = [#tpu.dimension_semantics<parallel>, #tpu.dimension_semantics<arbitrary>], iteration_bounds = array<i64: 1, 1>, scalar_prefetch = 0 : i64, scratch_operands = 0 : i64, tpu.core_type = #tpu.core_type<tc>, window_params = [{transform_indices = @transform_0, window_bounds = array<i64: 2, 2, 128>}, {transform_indices = @transform_1, window_bounds = array<i64: 2, 128>}, {transform_indices = @transform_2, window_bounds = array<i64: 2, 2, 128>}]} {
    %c0 = arith.constant 0 : index
    %c0_0 = arith.constant 0 : index
    %0 = vector.load %arg3[%c0, %c0_0] : memref<2x128xf32, #tpu.memory_space<vmem>>, vector<2x128xf32>
    %c0_1 = arith.constant 0 : index
    %c0_2 = arith.constant 0 : index
    %c0_3 = arith.constant 0 : index
    %1 = vector.load %arg2[%c0_1, %c0_2, %c0_3] : memref<2x2x128xf32, #tpu.memory_space<vmem>>, vector<2x2x128xf32>
    %2 = vector.shape_cast %0 : vector<2x128xf32> to vector<1x2x128xf32>
    %3 = vector.broadcast %2 : vector<1x2x128xf32> to vector<2x2x128xf32>
    %4 = arith.addf %1, %3 : vector<2x2x128xf32>
    %c0_4 = arith.constant 0 : index
    %c0_5 = arith.constant 0 : index
    %c0_6 = arith.constant 0 : index
    %5 = vector.load %arg4[%c0_4, %c0_5, %c0_6] : memref<2x2x128xf32, #tpu.memory_space<vmem>>, vector<2x2x128xf32>
    tpu.vector_store %arg4[%c0_4, %c0_5, %c0_6], %4 {strides = array<i32>} : memref<2x2x128xf32, #tpu.memory_space<vmem>>, vector<2x2x128xf32>,
    return
  }
  func.func @transform_0(%arg0: i32, %arg1: i32) -> (i32, i32, i32) {
    %c0_i32 = arith.constant 0 : i32
    %c0_i32_0 = arith.constant 0 : i32
    return %arg0, %arg1, %c0_i32 : i32, i32, i32
  }
  func.func @transform_1(%arg0: i32, %arg1: i32) -> (i32, i32) {
    %c0_i32 = arith.constant 0 : i32
    %c0_i32_0 = arith.constant 0 : i32
    return %arg1, %c0_i32 : i32, i32
  }
  func.func @transform_2(%arg0: i32, %arg1: i32) -> (i32, i32, i32) {
    %c0_i32 = arith.constant 0 : i32
    %c0_i32_0 = arith.constant 0 : i32
    return %arg0, %arg1, %c0_i32 : i32, i32, i32
  }
}

</mosaic_0001>

<llo_original>
// kernel: tpu_custom_call.1
$region0: #{tpu_custom_call.1}
  #allocation0 [shape = 'u32[]', space=smem, size = 0x4, offset = 0x4, fixed_abs, tag = 'smem constant byte address 0x4 - core index']
  #allocation1 [shape = 'u32[144,128]{1,0:T(1,128)}', space=vmem, size = 0x12000, scoped, tag = 'internal scratch']
  %s0 = inlined_call_operand.hbm [shape: f32[2,2,128], index: 0, kind: input, shape index: {}]
  %s1 = inlined_call_operand.vmem [shape: f32[2,128], index: 1, kind: input, shape index: {}]
  %s2 = inlined_call_operand.hbm [shape: f32[2,2,128], index: 2, kind: output, shape index: {}]
  %s3 = sld [smem:[#allocation0]]
  $region22: #{tpu_custom_call.1} parent=0
    _
  %s5 = ssub.s32 1, %s3
  %s6 = scalar_select 0, %s5, %s3
  $region1: #{tpu_custom_call.1} parent=0
    #allocation2 [shape = 'u8[2048]{0}', space=vmem, size = 0x800, scoped, tag = 'input window, operand 0, single buffered']
    #allocation3 [shape = 's32[1]{0}', space=sflag, size = 0x4, scoped, tag = 'scoped memory for tpu_custom_call.1']
    #allocation4 [shape = 's32[1]{0}', space=sflag, size = 0x4, scoped, tag = 'scoped memory for tpu_custom_call.1']
    #allocation5 [shape = 'u8[2048]{0}', space=vmem, size = 0x800, scoped, tag = 'output window, operand 0, single buffered']
    %7 = vsyncpa [#allocation3], 0
    %8 = vsyncpa [#allocation4], 0
    // Predicated region
    $region2: #{tpu_custom_call.1} parent=1 // pred_check
      _
    $region3: #{tpu_custom_call.1} parent=1 // pred_check_branch
      %10 = sbr.rel (0) target = $region5
    $region4: #{tpu_custom_call.1} parent=1 // pred_region
      %s12 = ssub.s32 64, 64
      %13 = vsyncadd [#allocation3], %s12
      %s14 = sshll.u32 [#allocation2], 4
      %s15 = int_to_ptr.vmem [resolvable:$true] %s14
      %20 = dma.hbm_to_vmem [thread:$0]  %s0, 64, %s15, [#allocation3], 32, 32, 2
    $region5: #{tpu_custom_call.1} parent=1 // pred_fallthru
      _
    // Predicated region
    $region6: #{tpu_custom_call.1} parent=1 // pred_check
      _
    $region7: #{tpu_custom_call.1} parent=1 // pred_check_branch
      %22 = sbr.rel (0) target = $region9
    $region8: #{tpu_custom_call.1} parent=1 // pred_region
      _
    $region9: #{tpu_custom_call.1} parent=1 // pred_fallthru
      _
    // Predicated region
    $region10: #{tpu_custom_call.1} parent=1 // pred_check
      _
    $region11: #{tpu_custom_call.1} parent=1 // pred_check_branch
      %24 = sbr.rel (0) target = $region13
    $region12: #{tpu_custom_call.1} parent=1 // pred_region
      %25 = dma.done [#allocation3], 64
    $region13: #{tpu_custom_call.1} parent=1 // pred_fallthru
      _
    %v26 = vld [vmem:[%s1] sm:$0x3]
    %v27 = vld [vmem:[#allocation2] sm:$0x3]
    %v28 = vld [vmem:[#allocation2 + $0x2] sm:$0x3]
    %v29 = vadd.f32 %v27, %v26
    %v30 = vadd.f32 %v28, %v26
    %31 = vst [vmem:[#allocation5] sm:$0x3] %v29
    %32 = vst [vmem:[#allocation5 + $0x2] sm:$0x3] %v30
    // Predicated region
    $region14: #{tpu_custom_call.1} parent=1 // pred_check
      _
    $region15: #{tpu_custom_call.1} parent=1 // pred_check_branch
      %34 = sbr.rel (0) target = $region17
    $region16: #{tpu_custom_call.1} parent=1 // pred_region
      %s36 = ssub.s32 64, 64
      %37 = vsyncadd [#allocation4], %s36
      %s38 = sshll.u32 [#allocation5], 4
      %s39 = int_to_ptr.vmem [resolvable:$true] %s38
      %44 = dma.vmem_to_hbm [thread:$0]  %s39, 64, %s2, [#allocation4], 32, 32, 2
    $region17: #{tpu_custom_call.1} parent=1 // pred_fallthru
      _
    // Predicated region
    $region18: #{tpu_custom_call.1} parent=1 // pred_check
      _
    $region19: #{tpu_custom_call.1} parent=1 // pred_check_branch
      %46 = sbr.rel (0) target = $region21
    $region20: #{tpu_custom_call.1} parent=1 // pred_region
      %47 = dma.done [#allocation4], 64
    $region21: #{tpu_custom_call.1} parent=1 // pred_fallthru
      _
    %48 = vsyncpa [#allocation3], 1
    %49 = vsyncpa [#allocation4], 1

</llo_original>
